<compile_context>
chip_gen: v7x
topology: tpu7x:2x2x1
jax: 0.10.0
libtpu: 0.0.40
codegen_flags: <defaults>
</compile_context>

<pallas_src>
import jax
import jax.numpy as jnp
from jax.experimental import pallas as pl
from jax.experimental.pallas import tpu as pltpu


def _round_up(n, m):
    return (n + m - 1) // m * m


def head_kernel(x_ref, w1_ref, b1_ref, alpha_ref, w2_ref, b2_ref, o_ref,
                acc_ref):
    k = pl.program_id(1)

    # ---- Linear1, K-split accumulation (MXU, bf16 operands, f32 acc) ----
    @pl.when(k == 0)
    def _():
        acc_ref[...] = jnp.zeros_like(acc_ref)

    acc_ref[...] += jnp.dot(x_ref[...].astype(jnp.bfloat16), w1_ref[...],
                            preferred_element_type=jnp.float32)

    # ---- finalize: bias + Dropout(eval: identity) + PReLU + Linear2 ----
    @pl.when(k == pl.num_programs(1) - 1)
    def _():
        h = acc_ref[...] + b1_ref[...]          # [tb, 256], f32
        a = alpha_ref[...]                      # [1, 256] per-channel slope
        h = jnp.where(h > 0.0, h, a * h)        # PReLU (VPU)
        o = jnp.dot(h.astype(jnp.bfloat16), w2_ref[...],
                    preferred_element_type=jnp.float32)
        o_ref[...] = (o + b2_ref[...]).astype(o_ref.dtype)


def head_forward(x_nchw, w1, b1, alpha, w2, b2, *, out_dtype=jnp.float32):
    """x_nchw: [B, C, H, W] float32. Returns [B, out_channels] (out_dtype).

    w1: [F, 256], b1/alpha: [1, 256] (or [256]), w2: [256, OUT], b2: [1, OUT].
    """
    B = x_nchw.shape[0]
    x2d = x_nchw.reshape(B, -1).astype(jnp.float32)   # Flatten (plain JAX glue)
    F = x2d.shape[1]
    H = w1.shape[1]                                   # 256
    OUT = w2.shape[1]

    # ---- tiling -------------------------------------------------------------
    OUT_P = _round_up(OUT, 128)                       # lane-dense output store

    tb = min(512, _round_up(B, 8))                    # batch tile
    if B >= 16 and pl.cdiv(B, tb) < 2:
        # v7x: give the "parallel" batch axis >= 2 steps (2 TensorCores).
        tb = _round_up(pl.cdiv(B, 2), 8)
    B_P = pl.cdiv(B, tb) * tb

    tk = F                                            # K tile over flatten dim
    for cand in (512, 256, 128):
        if F % cand == 0:
            tk = cand
            break
    nk = F // tk

    # ---- operands (no full bf16 copy of x; tiny batch pad only if needed) ---
    x_in = x2d if B_P == B else jnp.pad(x2d, ((0, B_P - B), (0, 0)))
    w1_b = w1.astype(jnp.bfloat16)
    b1_f = b1.reshape(1, H).astype(jnp.float32)
    a_f = alpha.reshape(1, H).astype(jnp.float32)
    w2_p = jnp.zeros((H, OUT_P), jnp.bfloat16).at[:, :OUT].set(
        w2.astype(jnp.bfloat16))
    b2_p = jnp.zeros((1, OUT_P), jnp.float32).at[:, :OUT].set(
        b2.reshape(1, OUT).astype(jnp.float32))

    # ---- VMEM budget (explicit: v5e scoped default is only 16 MiB) ----------
    vmem_est = (2 * tb * tk * 4                 # x tiles, f32, double-buffered
                + 2 * tk * H * 2                # w1 tiles, bf16, double-buffered
                + 2 * tb * OUT_P * 4            # output tiles
                + tb * H * 4                    # f32 accumulator scratch
                + 2 * (H * OUT_P + 3 * OUT_P + 2 * H) * 4)   # small constants
    vmem_limit = int(min(64 << 20, max(16 << 20, 2 * vmem_est)))

    out = pl.pallas_call(
        head_kernel,
        out_shape=jax.ShapeDtypeStruct((B_P, OUT_P), out_dtype),
        grid=(B_P // tb, nk),
        in_specs=[
            pl.BlockSpec((tb, tk), lambda i, k: (i, k)),      # x: batch x K
            pl.BlockSpec((tk, H), lambda i, k: (k, 0)),       # w1: K-split
            pl.BlockSpec((1, H), lambda i, k: (0, 0)),        # b1 (resident)
            pl.BlockSpec((1, H), lambda i, k: (0, 0)),        # prelu alpha
            pl.BlockSpec((H, OUT_P), lambda i, k: (0, 0)),    # w2 (padded)
            pl.BlockSpec((1, OUT_P), lambda i, k: (0, 0)),    # b2 (padded)
        ],
        out_specs=pl.BlockSpec((tb, OUT_P), lambda i, k: (i, 0)),
        scratch_shapes=[pltpu.VMEM((tb, H), jnp.float32)],
        compiler_params=pltpu.CompilerParams(
            dimension_semantics=("parallel", "arbitrary"),
            vmem_limit_bytes=vmem_limit),
    )(x_in, w1_b, b1_f, a_f, w2_p, b2_p)

    return out[:B, :OUT]


if __name__ == "__main__":
    # Small, deterministic setup consistent with the module:
    # input (B=2, C=4, H=16, W=16) -> flatten dim in_channels = 1024
    B, C, Hs, Ws = 2, 4, 16, 16
    IN = C * Hs * Ws          # 1024
    HID = 256
    OUT = 10

    key = jax.random.PRNGKey(0)
    kx, kw1, kb1, kw2, kb2 = jax.random.split(key, 5)

    x = jax.random.normal(kx, (B, C, Hs, Ws), dtype=jnp.float32)

    # Deterministic parameter init (uniform, PyTorch-Linear-style bounds).
    bound1 = 1.0 / (IN ** 0.5)
    w1 = jax.random.uniform(kw1, (IN, HID), jnp.float32, -bound1, bound1)
    b1 = jax.random.uniform(kb1, (1, HID), jnp.float32, -bound1, bound1)
    alpha = jnp.full((1, HID), 0.25, dtype=jnp.float32)   # nn.PReLU(256) default

    bound2 = 1.0 / (HID ** 0.5)
    w2 = jax.random.uniform(kw2, (HID, OUT), jnp.float32, -bound2, bound2)
    b2 = jax.random.uniform(kb2, (1, OUT), jnp.float32, -bound2, bound2)

    out = head_forward(x, w1, b1, alpha, w2, b2)
    out = jax.block_until_ready(out)

    # Pure-JAX reference mirroring the kernel's bf16 MXU rounding.
    x2d = x.reshape(B, -1)
    xb = x2d.astype(jnp.bfloat16).astype(jnp.float32)
    w1b = w1.astype(jnp.bfloat16).astype(jnp.float32)
    h_ref = xb @ w1b + b1
    h_ref = jnp.where(h_ref > 0, h_ref, alpha * h_ref)
    hb = h_ref.astype(jnp.bfloat16).astype(jnp.float32)
    w2b = w2.astype(jnp.bfloat16).astype(jnp.float32)
    ref = hb @ w2b + b2

    assert out.shape == (B, OUT)
    assert jnp.allclose(out, ref, atol=2e-3, rtol=2e-3)

    print("KERNEL_OK")
</pallas_src>

<mosaic_0001>
module attributes {stable_mosaic.version = 11 : i64} {
  func.func @head_kernel(%arg0: i32, %arg1: i32, %arg2: memref<8x512xf32, #tpu.memory_space<vmem>>, %arg3: memref<512x256xbf16, #tpu.memory_space<vmem>>, %arg4: memref<1x256xf32, #tpu.memory_space<vmem>>, %arg5: memref<1x256xf32, #tpu.memory_space<vmem>>, %arg6: memref<256x128xbf16, #tpu.memory_space<vmem>>, %arg7: memref<1x128xf32, #tpu.memory_space<vmem>>, %arg8: memref<8x128xf32, #tpu.memory_space<vmem>>, %arg9: memref<8x256xf32, #tpu.memory_space<vmem>>) attributes {dimension_semantics = [#tpu.dimension_semantics<parallel>, #tpu.dimension_semantics<arbitrary>], iteration_bounds = array<i64: 1, 2>, scalar_prefetch = 0 : i64, scratch_operands = 1 : i64, tpu.core_type = #tpu.core_type<tc>, window_params = [{transform_indices = @transform_0, window_bounds = array<i64: 8, 512>}, {transform_indices = @transform_1, window_bounds = array<i64: 512, 256>}, {pipeline_mode = #tpu.pipeline_mode<synchronous>, transform_indices = @transform_2, window_bounds = array<i64: 1, 256>}, {pipeline_mode = #tpu.pipeline_mode<synchronous>, transform_indices = @transform_3, window_bounds = array<i64: 1, 256>}, {pipeline_mode = #tpu.pipeline_mode<synchronous>, transform_indices = @transform_4, window_bounds = array<i64: 256, 128>}, {pipeline_mode = #tpu.pipeline_mode<synchronous>, transform_indices = @transform_5, window_bounds = array<i64: 1, 128>}, {transform_indices = @transform_6, window_bounds = array<i64: 8, 128>}]} {
    %c0_i32 = arith.constant 0 : i32
    %0 = arith.cmpi eq, %arg1, %c0_i32 : i32
    %1 = arith.extui %0 : i1 to i32
    %c0_i32_0 = arith.constant 0 : i32
    %2 = arith.cmpi ne, %1, %c0_i32_0 : i32
    scf.if %2 {
      %cst_9 = arith.constant 0.000000e+00 : f32
      %13 = vector.broadcast %cst_9 : f32 to vector<8x256xf32>
      %c0_10 = arith.constant 0 : index
      %c0_11 = arith.constant 0 : index
      %14 = vector.load %arg9[%c0_10, %c0_11] : memref<8x256xf32, #tpu.memory_space<vmem>>, vector<8x256xf32>
      tpu.vector_store %arg9[%c0_10, %c0_11], %13 {strides = array<i32>} : memref<8x256xf32, #tpu.memory_space<vmem>>, vector<8x256xf32>,
    } else {
    }
    %c0 = arith.constant 0 : index
    %c0_1 = arith.constant 0 : index
    %3 = vector.load %arg9[%c0, %c0_1] : memref<8x256xf32, #tpu.memory_space<vmem>>, vector<8x256xf32>
    %c0_2 = arith.constant 0 : index
    %c0_3 = arith.constant 0 : index
    %4 = vector.load %arg2[%c0_2, %c0_3] : memref<8x512xf32, #tpu.memory_space<vmem>>, vector<8x512xf32>
    %5 = arith.truncf %4 : vector<8x512xf32> to vector<8x512xbf16>
    %c0_4 = arith.constant 0 : index
    %c0_5 = arith.constant 0 : index
    %6 = vector.load %arg3[%c0_4, %c0_5] : memref<512x256xbf16, #tpu.memory_space<vmem>>, vector<512x256xbf16>
    %cst = arith.constant dense<0.000000e+00> : vector<8x256xf32>
    %7 = tpu.matmul %5, %6, %cst {dimension_numbers = #tpu.dot_dimension_numbers<[1], [0], [0], [1], [0, 0, 1, 1], [], []>} : vector<8x512xbf16>, vector<512x256xbf16>, vector<8x256xf32> -> vector<8x256xf32>
    %8 = arith.addf %3, %7 : vector<8x256xf32>
    %c0_6 = arith.constant 0 : index
    %c0_7 = arith.constant 0 : index
    %9 = vector.load %arg9[%c0_6, %c0_7] : memref<8x256xf32, #tpu.memory_space<vmem>>, vector<8x256xf32>
    tpu.vector_store %arg9[%c0_6, %c0_7], %8 {strides = array<i32>} : memref<8x256xf32, #tpu.memory_space<vmem>>, vector<8x256xf32>,
    %c1_i32 = arith.constant 1 : i32
    %10 = arith.cmpi eq, %arg1, %c1_i32 : i32
    %11 = arith.extui %10 : i1 to i32
    %c0_i32_8 = arith.constant 0 : i32
    %12 = arith.cmpi ne, %11, %c0_i32_8 : i32
    scf.if %12 {
      %c0_9 = arith.constant 0 : index
      %c0_10 = arith.constant 0 : index
      %13 = vector.load %arg9[%c0_9, %c0_10] : memref<8x256xf32, #tpu.memory_space<vmem>>, vector<8x256xf32>
      %c0_11 = arith.constant 0 : index
      %c0_12 = arith.constant 0 : index
      %14 = vector.load %arg4[%c0_11, %c0_12] : memref<1x256xf32, #tpu.memory_space<vmem>>, vector<1x256xf32>
      %15 = vector.broadcast %14 : vector<1x256xf32> to vector<8x256xf32>
      %16 = arith.addf %13, %15 : vector<8x256xf32>
      %c0_13 = arith.constant 0 : index
      %c0_14 = arith.constant 0 : index
      %17 = vector.load %arg5[%c0_13, %c0_14] : memref<1x256xf32, #tpu.memory_space<vmem>>, vector<1x256xf32>
      %cst_15 = arith.constant 0.000000e+00 : f32
      %18 = vector.broadcast %cst_15 : f32 to vector<8x256xf32>
      %19 = arith.cmpf ogt, %16, %18 : vector<8x256xf32>
      %20 = vector.broadcast %17 : vector<1x256xf32> to vector<8x256xf32>
      %21 = arith.mulf %20, %16 : vector<8x256xf32>
      %22 = arith.select %19, %16, %21 : vector<8x256xi1>, vector<8x256xf32>
      %23 = arith.truncf %22 : vector<8x256xf32> to vector<8x256xbf16>
      %c0_16 = arith.constant 0 : index
      %c0_17 = arith.constant 0 : index
      %24 = vector.load %arg6[%c0_16, %c0_17] : memref<256x128xbf16, #tpu.memory_space<vmem>>, vector<256x128xbf16>
      %cst_18 = arith.constant dense<0.000000e+00> : vector<8x128xf32>
      %25 = tpu.matmul %23, %24, %cst_18 {dimension_numbers = #tpu.dot_dimension_numbers<[1], [0], [0], [1], [0, 0, 1, 1], [], []>} : vector<8x256xbf16>, vector<256x128xbf16>, vector<8x128xf32> -> vector<8x128xf32>
      %c0_19 = arith.constant 0 : index
      %c0_20 = arith.constant 0 : index
      %26 = vector.load %arg7[%c0_19, %c0_20] : memref<1x128xf32, #tpu.memory_space<vmem>>, vector<1x128xf32>
      %27 = vector.broadcast %26 : vector<1x128xf32> to vector<8x128xf32>
      %28 = arith.addf %25, %27 : vector<8x128xf32>
      %c0_21 = arith.constant 0 : index
      %c0_22 = arith.constant 0 : index
      %29 = vector.load %arg8[%c0_21, %c0_22] : memref<8x128xf32, #tpu.memory_space<vmem>>, vector<8x128xf32>
      tpu.vector_store %arg8[%c0_21, %c0_22], %28 {strides = array<i32>} : memref<8x128xf32, #tpu.memory_space<vmem>>, vector<8x128xf32>,
    } else {
    }
    return
  }
  func.func @transform_0(%arg0: i32, %arg1: i32) -> (i32, i32) {
    %c0_i32 = arith.constant 0 : i32
    return %arg0, %arg1 : i32, i32
  }
  func.func @transform_1(%arg0: i32, %arg1: i32) -> (i32, i32) {
    %c0_i32 = arith.constant 0 : i32
    %c0_i32_0 = arith.constant 0 : i32
    return %arg1, %c0_i32 : i32, i32
  }
  func.func @transform_2(%arg0: i32, %arg1: i32) -> (i32, i32) {
    %c0_i32 = arith.constant 0 : i32
    %c0_i32_0 = arith.constant 0 : i32
    %c0_i32_1 = arith.constant 0 : i32
    return %c0_i32, %c0_i32_0 : i32, i32
  }
  func.func @transform_3(%arg0: i32, %arg1: i32) -> (i32, i32) {
    %c0_i32 = arith.constant 0 : i32
    %c0_i32_0 = arith.constant 0 : i32
    %c0_i32_1 = arith.constant 0 : i32
    return %c0_i32, %c0_i32_0 : i32, i32
  }
  func.func @transform_4(%arg0: i32, %arg1: i32) -> (i32, i32) {
    %c0_i32 = arith.constant 0 : i32
    %c0_i32_0 = arith.constant 0 : i32
    %c0_i32_1 = arith.constant 0 : i32
    return %c0_i32, %c0_i32_0 : i32, i32
  }
  func.func @transform_5(%arg0: i32, %arg1: i32) -> (i32, i32) {
    %c0_i32 = arith.constant 0 : i32
    %c0_i32_0 = arith.constant 0 : i32
    %c0_i32_1 = arith.constant 0 : i32
    return %c0_i32, %c0_i32_0 : i32, i32
  }
  func.func @transform_6(%arg0: i32, %arg1: i32) -> (i32, i32) {
    %c0_i32 = arith.constant 0 : i32
    %c0_i32_0 = arith.constant 0 : i32
    return %arg0, %c0_i32 : i32, i32
  }
}

</mosaic_0001>

<llo_original>
// kernel: tpu_custom_call.1
$region0: #{tpu_custom_call.1}
  #allocation0 [shape = 'u32[]', space=smem, size = 0x4, offset = 0x4, fixed_abs, tag = 'smem constant byte address 0x4 - core index']
  #allocation1 [shape = 'u32[144,128]{1,0:T(1,128)}', space=vmem, size = 0x12000, scoped, tag = 'internal scratch']
  #allocation2 [shape = 'f32[8,256]{1,0:T(8,128)}', space=vmem, size = 0x2000, scoped, tag = 'scratch operand']
  %s0 = inlined_call_operand.hbm [shape: f32[8,1024], index: 0, kind: input, shape index: {}]
  %s1 = inlined_call_operand.hbm [shape: bf16[1024,256], index: 1, kind: input, shape index: {}]
  %s2 = inlined_call_operand.vmem [shape: f32[1,256], index: 2, kind: input, shape index: {}]
  %s3 = inlined_call_operand.vmem [shape: f32[1,256], index: 3, kind: input, shape index: {}]
  %s4 = inlined_call_operand.hbm [shape: bf16[256,128], index: 4, kind: input, shape index: {}]
  %s5 = inlined_call_operand.vmem [shape: f32[1,128], index: 5, kind: input, shape index: {}]
  %s6 = inlined_call_operand.hbm [shape: f32[8,128], index: 6, kind: output, shape index: {}]
  %s7 = sld [smem:[#allocation0]]
  $region77: #{tpu_custom_call.1} parent=0
    _
  %s9 = ssub.s32 1, %s7
  %s10 = scalar_select 0, %s9, %s7
  $region1: #{tpu_custom_call.1} parent=0
    #allocation3 [shape = 'u8[32768]{0}', space=vmem, size = 0x8000, scoped, tag = 'input window, operand 0']
    #allocation4 [shape = 's32[2]{0}', space=sflag, size = 0x8, scoped, tag = 'scoped memory for tpu_custom_call.1']
    #allocation5 [shape = 's32[2]{0}', space=sflag, size = 0x8, scoped, tag = 'scoped memory for tpu_custom_call.1']
    #allocation6 [shape = 'u8[524288]{0}', space=vmem, size = 0x80000, scoped, tag = 'input window, operand 1']
    #allocation7 [shape = 's32[2]{0}', space=sflag, size = 0x8, scoped, tag = 'scoped memory for tpu_custom_call.1']
    #allocation8 [shape = 'u8[65536]{0}', space=vmem, size = 0x10000, scoped, tag = 'input window, operand 4, single buffered']
    #allocation9 [shape = 'u8[4096]{0}', space=vmem, size = 0x1000, scoped, tag = 'output window, operand 0, single buffered']
    %11 = vsyncpa [#allocation4], 0
    %s12 = scalar_lea.sflag [#allocation4], 1
    %13 = vsyncpa %s12, 0
    %14 = vsyncpa [#allocation7], 0
    %s15 = scalar_lea.sflag [#allocation7], 1
    %16 = vsyncpa %s15, 0
    %17 = vsyncpa [#allocation5], 0
    loop: start=0, step=1, limit=4
    $region2: #{tpu_custom_call.1} parent=1 // loop_pre_header
      _
    $region3: #{tpu_custom_call.1} parent=1 // loop_header
      %s19 = sphi 0, %s23
      %p20 = scmp.ge.s32.totalorder %s19, 4
      %s26 = sphi 0, %s38
      %s27 = sphi 0, %s34
      %s28 = sphi 0, %s26
      %s29 = sphi 0, %s27
      %s30 = sphi 0, %s28
      %s31 = sphi 0, %s29
      %s43 = sphi 0, %s45
      %s46 = sphi 0, %s43
      %s47 = sphi 0, %s46
      %s63 = sphi 0, %s47
      %s69 = sphi 0, %s71
      %s72 = sphi 0, %s69
      %s73 = sphi 0, %s72
      %s89 = sphi 0, %s73
      %s93 = sphi 0, %s93
      %s95 = sphi 0, %s93
      %s96 = sphi 0, %s95
      %s110 = sphi 0, %s96
      %s114 = sphi 0, %s114
      %s116 = sphi 0, %s114
      %s117 = sphi 0, %s116
      %s131 = sphi 0, %s117
      %s135 = sphi 0, %s135
      %s137 = sphi 0, %s135
      %s138 = sphi 0, %s137
      %s152 = sphi 0, %s138
      %s156 = sphi 0, %s156
      %s158 = sphi 0, %s156
      %s159 = sphi 0, %s158
      %s173 = sphi 0, %s159
      %s179 = sphi 0, %s181
      %s182 = sphi 0, %s179
      %s183 = sphi 0, %s182
      %s199 = sphi 0, %s183
    $region4: #{tpu_custom_call.1} parent=1 // loop_header_branch
      %22 = sbr.rel (%p20) target = $region8
    $region5: #{tpu_custom_call.1} parent=1 // loop_body
      %s24 = ssub.s32 %s19, 1
      %s25 = ssub.s32 %s19, 2
      %s32 = sadd.s32 1, %s27
      %p33 = scmp.ge.s32.totalorder %s32, 2
      %s34 = scalar_select %p33, 0, %s32
      %s35 = sadd.s32 1, %s26
      %s36 = scalar_select %p33, %s35, %s26
      %p37 = scmp.ge.s32.totalorder %s36, 1
      %s38 = scalar_select %p37, 0, %s36
      %s39 = ssub.s32 %s26, %s38
      %s40 = ssub.s32 %s27, %s34
      %s41 = sor.u32 %s39, %s40
      %p42 = scmp.eq.s32.totalorder %s41, 0
      %s44 = sadd.s32 %s43, 1
      %s45 = scalar_select %p42, %s43, %s44
      %p48 = pneg %p42
      %p49 = scmp.eq.s32.totalorder %s19, 1
      %p50 = por %p48, %p49
      %p51 = scmp.ne.s32.totalorder %s43, %s46
      %p52 = scmp.eq.s32.totalorder %s19, 0
      %p53 = por %p51, %p52
      %p54 = scmp.ne.s32.totalorder %s43, %s46
      %p55 = scmp.eq.s32.totalorder %s24, 1
      %p56 = por %p54, %p55
      %p57 = scmp.ne.s32.totalorder %s46, %s47
      %p58 = scmp.eq.s32.totalorder %s24, 0
      %p59 = por %p57, %p58
      %p60 = scmp.ne.s32.totalorder %s46, %s47
      %p61 = scmp.eq.s32.totalorder %s25, 1
      %p62 = por %p60, %p61
      %p64 = scmp.ne.s32.totalorder %s47, %s63
      %p65 = scmp.eq.s32.totalorder %s25, 0
      %p66 = por %p64, %p65
      %s67 = ssub.s32 %s27, %s34
      %p68 = scmp.eq.s32.totalorder %s67, 0
      %s70 = sadd.s32 %s69, 1
      %s71 = scalar_select %p68, %s69, %s70
      %p74 = pneg %p68
      %p75 = scmp.eq.s32.totalorder %s19, 1
      %p76 = por %p74, %p75
      %p77 = scmp.ne.s32.totalorder %s69, %s72
      %p78 = scmp.eq.s32.totalorder %s19, 0
      %p79 = por %p77, %p78
      %p80 = scmp.ne.s32.totalorder %s69, %s72
      %p81 = scmp.eq.s32.totalorder %s24, 1
      %p82 = por %p80, %p81
      %p83 = scmp.ne.s32.totalorder %s72, %s73
      %p84 = scmp.eq.s32.totalorder %s24, 0
      %p85 = por %p83, %p84
      %p86 = scmp.ne.s32.totalorder %s72, %s73
      %p87 = scmp.eq.s32.totalorder %s25, 1
      %p88 = por %p86, %p87
      %p90 = scmp.ne.s32.totalorder %s73, %s89
      %p91 = scmp.eq.s32.totalorder %s25, 0
      %p92 = por %p90, %p91
      %s94 = sadd.s32 %s93, 1
      %p97 = scmp.eq.s32.totalorder %s19, 1
      %p98 = scmp.ne.s32.totalorder %s93, %s95
      %p99 = scmp.eq.s32.totalorder %s19, 0
      %p100 = por %p98, %p99
      %p101 = scmp.ne.s32.totalorder %s93, %s95
      %p102 = scmp.eq.s32.totalorder %s24, 1
      %p103 = por %p101, %p102
      %p104 = scmp.ne.s32.totalorder %s95, %s96
      %p105 = scmp.eq.s32.totalorder %s24, 0
      %p106 = por %p104, %p105
      %p107 = scmp.ne.s32.totalorder %s95, %s96
      %p108 = scmp.eq.s32.totalorder %s25, 1
      %p109 = por %p107, %p108
      %p111 = scmp.ne.s32.totalorder %s96, %s110
      %p112 = scmp.eq.s32.totalorder %s25, 0
      %p113 = por %p111, %p112
      %s115 = sadd.s32 %s114, 1
      %p118 = scmp.eq.s32.totalorder %s19, 1
      %p119 = scmp.ne.s32.totalorder %s114, %s116
      %p120 = scmp.eq.s32.totalorder %s19, 0
      %p121 = por %p119, %p120
      %p122 = scmp.ne.s32.totalorder %s114, %s116
      %p123 = scmp.eq.s32.totalorder %s24, 1
      %p124 = por %p122, %p123
      %p125 = scmp.ne.s32.totalorder %s116, %s117
      %p126 = scmp.eq.s32.totalorder %s24, 0
      %p127 = por %p125, %p126
      %p128 = scmp.ne.s32.totalorder %s116, %s117
      %p129 = scmp.eq.s32.totalorder %s25, 1
      %p130 = por %p128, %p129
      %p132 = scmp.ne.s32.totalorder %s117, %s131
      %p133 = scmp.eq.s32.totalorder %s25, 0
      %p134 = por %p132, %p133
      %s136 = sadd.s32 %s135, 1
      %p139 = scmp.eq.s32.totalorder %s19, 1
      %p140 = scmp.ne.s32.totalorder %s135, %s137
      %p141 = scmp.eq.s32.totalorder %s19, 0
      %p142 = por %p140, %p141
      %p143 = scmp.ne.s32.totalorder %s135, %s137
      %p144 = scmp.eq.s32.totalorder %s24, 1
      %p145 = por %p143, %p144
      %p146 = scmp.ne.s32.totalorder %s137, %s138
      %p147 = scmp.eq.s32.totalorder %s24, 0
      %p148 = por %p146, %p147
      %p149 = scmp.ne.s32.totalorder %s137, %s138
      %p150 = scmp.eq.s32.totalorder %s25, 1
      %p151 = por %p149, %p150
      %p153 = scmp.ne.s32.totalorder %s138, %s152
      %p154 = scmp.eq.s32.totalorder %s25, 0
      %p155 = por %p153, %p154
      %s157 = sadd.s32 %s156, 1
      %p160 = scmp.eq.s32.totalorder %s19, 1
      %p161 = scmp.ne.s32.totalorder %s156, %s158
      %p162 = scmp.eq.s32.totalorder %s19, 0
      %p163 = por %p161, %p162
      %p164 = scmp.ne.s32.totalorder %s156, %s158
      %p165 = scmp.eq.s32.totalorder %s24, 1
      %p166 = por %p164, %p165
      %p167 = scmp.ne.s32.totalorder %s158, %s159
      %p168 = scmp.eq.s32.totalorder %s24, 0
      %p169 = por %p167, %p168
      %p170 = scmp.ne.s32.totalorder %s158, %s159
      %p171 = scmp.eq.s32.totalorder %s25, 1
      %p172 = por %p170, %p171
      %p174 = scmp.ne.s32.totalorder %s159, %s173
      %p175 = scmp.eq.s32.totalorder %s25, 0
      %p176 = por %p174, %p175
      %s177 = ssub.s32 %s26, %s38
      %p178 = scmp.eq.s32.totalorder %s177, 0
      %s180 = sadd.s32 %s179, 1
      %s181 = scalar_select %p178, %s179, %s180
      %p184 = pneg %p178
      %p185 = scmp.eq.s32.totalorder %s19, 1
      %p186 = por %p184, %p185
      %p187 = scmp.ne.s32.totalorder %s179, %s182
      %p188 = scmp.eq.s32.totalorder %s19, 0
      %p189 = por %p187, %p188
      %p190 = scmp.ne.s32.totalorder %s179, %s182
      %p191 = scmp.eq.s32.totalorder %s24, 1
      %p192 = por %p190, %p191
      %p193 = scmp.ne.s32.totalorder %s182, %s183
      %p194 = scmp.eq.s32.totalorder %s24, 0
      %p195 = por %p193, %p194
      %p196 = scmp.ne.s32.totalorder %s182, %s183
      %p197 = scmp.eq.s32.totalorder %s25, 1
      %p198 = por %p196, %p197
      %p200 = scmp.ne.s32.totalorder %s183, %s199
      %p201 = scmp.eq.s32.totalorder %s25, 0
      %p202 = por %p200, %p201
      %p203 = scmp.le.s32.totalorder 1, %s19
      %p204 = scmp.lt.s32.totalorder %s19, 3
      %p205 = pnand %p203, %p204
      %p206 = pneg %p205
      // Predicated region
      $region9: #{tpu_custom_call.1} parent=5 // pred_check
        _
      $region10: #{tpu_custom_call.1} parent=5 // pred_check_branch
        %208 = sbr.rel (%p205) target = $region12
      $region11: #{tpu_custom_call.1} parent=5 // pred_region
        %s209 = ssub.s32 %s19, 1
        // Predicated region
        $region13: #{tpu_custom_call.1} parent=11 // pred_check
          %p210 = pneg %p106
        $region14: #{tpu_custom_call.1} parent=11 // pred_check_branch
          %212 = sbr.rel (%p210) target = $region16
        $region15: #{tpu_custom_call.1} parent=11 // pred_region
          _
        $region16: #{tpu_custom_call.1} parent=11 // pred_fallthru
          _
        // Predicated region
        $region17: #{tpu_custom_call.1} parent=11 // pred_check
          %p213 = pneg %p127
        $region18: #{tpu_custom_call.1} parent=11 // pred_check_branch
          %215 = sbr.rel (%p213) target = $region20
        $region19: #{tpu_custom_call.1} parent=11 // pred_region
          _
        $region20: #{tpu_custom_call.1} parent=11 // pred_fallthru
          _
        // Predicated region
        $region21: #{tpu_custom_call.1} parent=11 // pred_check
          %p216 = pneg %p148
        $region22: #{tpu_custom_call.1} parent=11 // pred_check_branch
          %218 = sbr.rel (%p216) target = $region24
        $region23: #{tpu_custom_call.1} parent=11 // pred_region
          %s220 = ssub.s32 2048, 2048
          %221 = vsyncadd [#allocation7], %s220
          %s222 = sshll.u32 [#allocation8], 4
          %s223 = int_to_ptr.vmem [resolvable:$true] %s222
          %228 = dma.hbm_to_vmem [thread:$0]  %s4, 2048, %s223, [#allocation7], 64, 64, 4
        $region24: #{tpu_custom_call.1} parent=11 // pred_fallthru
          _
        // Predicated region
        $region25: #{tpu_custom_call.1} parent=11 // pred_check
          %p229 = pneg %p169
        $region26: #{tpu_custom_call.1} parent=11 // pred_check_branch
          %231 = sbr.rel (%p229) target = $region28
        $region27: #{tpu_custom_call.1} parent=11 // pred_region
          _
        $region28: #{tpu_custom_call.1} parent=11 // pred_fallthru
          _
      $region12: #{tpu_custom_call.1} parent=5 // pred_fallthru
        _
      %p232 = scmp.lt.s32.totalorder %s19, 2
      // Predicated region
      $region29: #{tpu_custom_call.1} parent=5 // pred_check
        %p233 = pneg %p232
      $region30: #{tpu_custom_call.1} parent=5 // pred_check_branch
        %235 = sbr.rel (%p233) target = $region32
      $region31: #{tpu_custom_call.1} parent=5 // pred_region
        // Predicated region
        $region33: #{tpu_custom_call.1} parent=31 // pred_check
          %p236 = pneg %p53
        $region34: #{tpu_custom_call.1} parent=31 // pred_check_branch
          %238 = sbr.rel (%p236) target = $region36
        $region35: #{tpu_custom_call.1} parent=31 // pred_region
          %s239 = sand.u32 %s43, 1
          %s240 = scalar_lea.sflag [#allocation4], %s239
          %s241 = sand.u32 %s43, 1
          %s242 = smul.addr %s241, 32
          %s243 = scalar_lea.vmem [#allocation3], %s242
          %s244 = smul.u32 4, %s27
          %s246 = ssub.s32 512, 512
          %247 = vsyncadd %s240, %s246
          %s248 = smul.addr %s26, 8
          %s249 = sadd.s32 %s244, %s248
          %s250 = smul.addr %s249, 128
          %s251 = scalar_lea.hbm %s0, %s250
          %s253 = sshll.u32 %s243, 4
          %s254 = int_to_ptr.vmem [resolvable:$true] %s253
          %256 = dma.hbm_to_vmem [thread:$0]  %s251, 512, %s254, %s240
        $region36: #{tpu_custom_call.1} parent=31 // pred_fallthru
          _
        // Predicated region
        $region37: #{tpu_custom_call.1} parent=31 // pred_check
          %p257 = pneg %p79
        $region38: #{tpu_custom_call.1} parent=31 // pred_check_branch
          %259 = sbr.rel (%p257) target = $region40
        $region39: #{tpu_custom_call.1} parent=31 // pred_region
          %s260 = sand.u32 %s19, 1
          %s261 = scalar_lea.sflag [#allocation7], %s260
          %s262 = sand.u32 %s69, 1
          %s263 = smul.addr %s262, 512
          %s264 = scalar_lea.vmem [#allocation6], %s263
          %s265 = smul.u32 64, %s27
          %s267 = ssub.s32 8192, 8192
          %268 = vsyncadd %s261, %s267
          %s269 = smul.addr %s265, 2
          %s270 = smul.addr %s269, 64
          %s271 = scalar_lea.hbm %s1, %s270
          %s272 = sshll.u32 %s264, 4
          %s273 = int_to_ptr.vmem [resolvable:$true] %s272
          %278 = dma.hbm_to_vmem [thread:$0]  %s271, 8192, %s273, %s261, 128, 128, 8
        $region40: #{tpu_custom_call.1} parent=31 // pred_fallthru
          _
      $region32: #{tpu_custom_call.1} parent=5 // pred_fallthru
        _
      %p279 = scmp.le.s32.totalorder 1, %s19
      %p280 = scmp.lt.s32.totalorder %s19, 3
      %p281 = pnand %p279, %p280
      %p282 = pneg %p281
      // Predicated region
      $region41: #{tpu_custom_call.1} parent=5 // pred_check
        _
      $region42: #{tpu_custom_call.1} parent=5 // pred_check_branch
        %284 = sbr.rel (%p281) target = $region44
      $region43: #{tpu_custom_call.1} parent=5 // pred_region
        %s285 = ssub.s32 %s19, 1
        %s286 = sand.u32 %s46, 1
        %s287 = scalar_lea.sflag [#allocation4], %s286
        %s288 = sand.u32 %s46, 1
        %s289 = smul.addr %s288, 32
        %s290 = scalar_lea.vmem [#allocation3], %s289
        // Predicated region
        $region45: #{tpu_custom_call.1} parent=43 // pred_check
          %p291 = pneg %p59
        $region46: #{tpu_custom_call.1} parent=43 // pred_check_branch
          %293 = sbr.rel (%p291) target = $region48
        $region47: #{tpu_custom_call.1} parent=43 // pred_region
          %294 = dma.done %s287, 512
        $region48: #{tpu_custom_call.1} parent=43 // pred_fallthru
          _
        %s295 = sand.u32 %s24, 1
        %s296 = scalar_lea.sflag [#allocation7], %s295
        %s297 = sand.u32 %s72, 1
        %s298 = smul.addr %s297, 512
        %s299 = scalar_lea.vmem [#allocation6], %s298
        // Predicated region
        $region49: #{tpu_custom_call.1} parent=43 // pred_check
          %p300 = pneg %p85
        $region50: #{tpu_custom_call.1} parent=43 // pred_check_branch
          %302 = sbr.rel (%p300) target = $region52
        $region51: #{tpu_custom_call.1} parent=43 // pred_region
          %303 = dma.done %s296, 8192
        $region52: #{tpu_custom_call.1} parent=43 // pred_fallthru
          _
        // Predicated region
        $region53: #{tpu_custom_call.1} parent=43 // pred_check
          %p304 = pneg %p148
        $region54: #{tpu_custom_call.1} parent=43 // pred_check_branch
          %306 = sbr.rel (%p304) target = $region56
        $region55: #{tpu_custom_call.1} parent=43 // pred_region
          %307 = dma.done [#allocation7], 2048
        $region56: #{tpu_custom_call.1} parent=43 // pred_fallthru
          _
        %s308 = sand.u32 %s46, 1
        %s309 = scalar_lea.sflag [#allocation4], %s308
        %s310 = sand.u32 %s46, 1
        %s311 = smul.addr %s310, 32
        %s312 = scalar_lea.vmem [#allocation3], %s311
        %p313 = pneg %p59
        %p314 = pneg %p56
        %s315 = sand.u32 %s24, 1
        %s316 = scalar_lea.sflag [#allocation7], %s315
        %s317 = sand.u32 %s72, 1
        %s318 = smul.addr %s317, 512
        %s319 = scalar_lea.vmem [#allocation6], %s318
        %p320 = pneg %p85
        %p321 = pneg %p82
        %p322 = pneg %p106
        %p323 = pneg %p103
        %p324 = pneg %p127
        %p325 = pneg %p124
        %p326 = pneg %p148
        %p327 = pneg %p145
        %p328 = pneg %p169
        %p329 = pneg %p166
        %p330 = pneg %p195
        %p331 = pneg %p192
        %s332 = smul.u32 4, %s29
        %s333 = smul.u32 64, %s29
        %p335 = scmp.eq.s32.totalorder %s29, 0
        // Predicated region
        $region57: #{tpu_custom_call.1} parent=43 // pred_check
          %p336 = pneg %p335
        $region58: #{tpu_custom_call.1} parent=43 // pred_check_branch
          %338 = sbr.rel (%p336) target = $region60
        $region59: #{tpu_custom_call.1} parent=43 // pred_region
          %339 = vst [vmem:[#allocation2] sm:$0xff] 0.0
          %340 = vst [vmem:[#allocation2 + $0x8] sm:$0xff] 0.0
        $region60: #{tpu_custom_call.1} parent=43 // pred_fallthru
          _
        %v341 = vld [vmem:[#allocation2] sm:$0xff]
        %v342 = vld [vmem:[#allocation2 + $0x8] sm:$0xff]
        %v343 = vld [vmem:[%s290] sm:$0xff]
        %v344 = vld [vmem:[%s290 + $0x8] sm:$0xff]
        %v345 = vld [vmem:[%s290 + $0x10] sm:$0xff]
        %v346 = vld [vmem:[%s290 + $0x18] sm:$0xff]
        %v347 = vpack.c.bf16 %v343, %v343
        %v348 = vpack.c.bf16 %v344, %v344
        %v349 = vpack.c.bf16 %v345, %v345
        %v350 = vpack.c.bf16 %v346, %v346
        %v351 = vld [vmem:[%s299] sm:$0xff]
        %v352 = vld [vmem:[%s299 + $0x8] sm:$0xff]
        %v353 = vld [vmem:[%s299 + $0x10] sm:$0xff]
        %v354 = vld [vmem:[%s299 + $0x18] sm:$0xff]
        %v355 = vld [vmem:[%s299 + $0x20] sm:$0xff]
        %v356 = vld [vmem:[%s299 + $0x28] sm:$0xff]
        %v357 = vld [vmem:[%s299 + $0x30] sm:$0xff]
        %v358 = vld [vmem:[%s299 + $0x38] sm:$0xff]
        %v359 = vld [vmem:[%s299 + $0x40] sm:$0xff]
        %v360 = vld [vmem:[%s299 + $0x48] sm:$0xff]
        %v361 = vld [vmem:[%s299 + $0x50] sm:$0xff]
        %v362 = vld [vmem:[%s299 + $0x58] sm:$0xff]
        %v363 = vld [vmem:[%s299 + $0x60] sm:$0xff]
        %v364 = vld [vmem:[%s299 + $0x68] sm:$0xff]
        %v365 = vld [vmem:[%s299 + $0x70] sm:$0xff]
        %v366 = vld [vmem:[%s299 + $0x78] sm:$0xff]
        %v367 = vld [vmem:[%s299 + $0x80] sm:$0xff]
        %v368 = vld [vmem:[%s299 + $0x88] sm:$0xff]
        %v369 = vld [vmem:[%s299 + $0x90] sm:$0xff]
        %v370 = vld [vmem:[%s299 + $0x98] sm:$0xff]
        %v371 = vld [vmem:[%s299 + $0xa0] sm:$0xff]
        %v372 = vld [vmem:[%s299 + $0xa8] sm:$0xff]
        %v373 = vld [vmem:[%s299 + $0xb0] sm:$0xff]
        %v374 = vld [vmem:[%s299 + $0xb8] sm:$0xff]
        %v375 = vld [vmem:[%s299 + $0xc0] sm:$0xff]
        %v376 = vld [vmem:[%s299 + $0xc8] sm:$0xff]
        %v377 = vld [vmem:[%s299 + $0xd0] sm:$0xff]
        %v378 = vld [vmem:[%s299 + $0xd8] sm:$0xff]
        %v379 = vld [vmem:[%s299 + $0xe0] sm:$0xff]
        %v380 = vld [vmem:[%s299 + $0xe8] sm:$0xff]
        %v381 = vld [vmem:[%s299 + $0xf0] sm:$0xff]
        %v382 = vld [vmem:[%s299 + $0xf8] sm:$0xff]
        %v383 = vld [vmem:[%s299 + $0x100] sm:$0xff]
        %v384 = vld [vmem:[%s299 + $0x108] sm:$0xff]
        %v385 = vld [vmem:[%s299 + $0x110] sm:$0xff]
        %v386 = vld [vmem:[%s299 + $0x118] sm:$0xff]
        %v387 = vld [vmem:[%s299 + $0x120] sm:$0xff]
        %v388 = vld [vmem:[%s299 + $0x128] sm:$0xff]
        %v389 = vld [vmem:[%s299 + $0x130] sm:$0xff]
        %v390 = vld [vmem:[%s299 + $0x138] sm:$0xff]
        %v391 = vld [vmem:[%s299 + $0x140] sm:$0xff]
        %v392 = vld [vmem:[%s299 + $0x148] sm:$0xff]
        %v393 = vld [vmem:[%s299 + $0x150] sm:$0xff]
        %v394 = vld [vmem:[%s299 + $0x158] sm:$0xff]
        %v395 = vld [vmem:[%s299 + $0x160] sm:$0xff]
        %v396 = vld [vmem:[%s299 + $0x168] sm:$0xff]
        %v397 = vld [vmem:[%s299 + $0x170] sm:$0xff]
        %v398 = vld [vmem:[%s299 + $0x178] sm:$0xff]
        %v399 = vld [vmem:[%s299 + $0x180] sm:$0xff]
        %v400 = vld [vmem:[%s299 + $0x188] sm:$0xff]
        %v401 = vld [vmem:[%s299 + $0x190] sm:$0xff]
        %v402 = vld [vmem:[%s299 + $0x198] sm:$0xff]
        %v403 = vld [vmem:[%s299 + $0x1a0] sm:$0xff]
        %v404 = vld [vmem:[%s299 + $0x1a8] sm:$0xff]
        %v405 = vld [vmem:[%s299 + $0x1b0] sm:$0xff]
        %v406 = vld [vmem:[%s299 + $0x1b8] sm:$0xff]
        %v407 = vld [vmem:[%s299 + $0x1c0] sm:$0xff]
        %v408 = vld [vmem:[%s299 + $0x1c8] sm:$0xff]
        %v409 = vld [vmem:[%s299 + $0x1d0] sm:$0xff]
        %v410 = vld [vmem:[%s299 + $0x1d8] sm:$0xff]
        %v411 = vld [vmem:[%s299 + $0x1e0] sm:$0xff]
        %v412 = vld [vmem:[%s299 + $0x1e8] sm:$0xff]
        %v413 = vld [vmem:[%s299 + $0x1f0] sm:$0xff]
        %v414 = vld [vmem:[%s299 + $0x1f8] sm:$0xff]
        %v479 = vunpack.c.l.b16 %v351
        %v480 = vunpack.c.h.b16 %v351
        %v481 = vunpack.c.l.b16 %v352
        %v482 = vunpack.c.h.b16 %v352
        %v483 = vunpack.c.l.b16 %v353
        %v484 = vunpack.c.h.b16 %v353
        %v485 = vunpack.c.l.b16 %v354
        %v486 = vunpack.c.h.b16 %v354
        %v487 = vunpack.c.l.b16 %v355
        %v488 = vunpack.c.h.b16 %v355
        %v489 = vunpack.c.l.b16 %v356
        %v490 = vunpack.c.h.b16 %v356
        %v491 = vunpack.c.l.b16 %v357
        %v492 = vunpack.c.h.b16 %v357
        %v493 = vunpack.c.l.b16 %v358
        %v494 = vunpack.c.h.b16 %v358
        %v495 = vunpack.c.l.b16 %v359
        %v496 = vunpack.c.h.b16 %v359
        %v497 = vunpack.c.l.b16 %v360
        %v498 = vunpack.c.h.b16 %v360
        %v499 = vunpack.c.l.b16 %v361
        %v500 = vunpack.c.h.b16 %v361
        %v501 = vunpack.c.l.b16 %v362
        %v502 = vunpack.c.h.b16 %v362
        %v503 = vunpack.c.l.b16 %v363
        %v504 = vunpack.c.h.b16 %v363
        %v505 = vunpack.c.l.b16 %v364
        %v506 = vunpack.c.h.b16 %v364
        %v507 = vunpack.c.l.b16 %v365
        %v508 = vunpack.c.h.b16 %v365
        %v509 = vunpack.c.l.b16 %v366
        %v510 = vunpack.c.h.b16 %v366
        %v511 = vunpack.c.l.b16 %v367
        %v512 = vunpack.c.h.b16 %v367
        %v513 = vunpack.c.l.b16 %v368
        %v514 = vunpack.c.h.b16 %v368
        %v515 = vunpack.c.l.b16 %v369
        %v516 = vunpack.c.h.b16 %v369
        %v517 = vunpack.c.l.b16 %v370
        %v518 = vunpack.c.h.b16 %v370
        %v519 = vunpack.c.l.b16 %v371
        %v520 = vunpack.c.h.b16 %v371
        %v521 = vunpack.c.l.b16 %v372
        %v522 = vunpack.c.h.b16 %v372
        %v523 = vunpack.c.l.b16 %v373
        %v524 = vunpack.c.h.b16 %v373
        %v525 = vunpack.c.l.b16 %v374
        %v526 = vunpack.c.h.b16 %v374
        %v527 = vunpack.c.l.b16 %v375
        %v528 = vunpack.c.h.b16 %v375
        %v529 = vunpack.c.l.b16 %v376
        %v530 = vunpack.c.h.b16 %v376
        %v531 = vunpack.c.l.b16 %v377
        %v532 = vunpack.c.h.b16 %v377
        %v533 = vunpack.c.l.b16 %v378
        %v534 = vunpack.c.h.b16 %v378
        %v535 = vunpack.c.l.b16 %v379
        %v536 = vunpack.c.h.b16 %v379
        %v537 = vunpack.c.l.b16 %v380
        %v538 = vunpack.c.h.b16 %v380
        %v539 = vunpack.c.l.b16 %v381
        %v540 = vunpack.c.h.b16 %v381
        %v541 = vunpack.c.l.b16 %v382
        %v542 = vunpack.c.h.b16 %v382
        %v543 = vunpack.c.l.b16 %v383
        %v544 = vunpack.c.h.b16 %v383
        %v545 = vunpack.c.l.b16 %v384
        %v546 = vunpack.c.h.b16 %v384
        %v547 = vunpack.c.l.b16 %v385
        %v548 = vunpack.c.h.b16 %v385
        %v549 = vunpack.c.l.b16 %v386
        %v550 = vunpack.c.h.b16 %v386
        %v551 = vunpack.c.l.b16 %v387
        %v552 = vunpack.c.h.b16 %v387
        %v553 = vunpack.c.l.b16 %v388
        %v554 = vunpack.c.h.b16 %v388
        %v555 = vunpack.c.l.b16 %v389
        %v556 = vunpack.c.h.b16 %v389
        %v557 = vunpack.c.l.b16 %v390
        %v558 = vunpack.c.h.b16 %v390
        %v559 = vunpack.c.l.b16 %v391
        %v560 = vunpack.c.h.b16 %v391
        %v561 = vunpack.c.l.b16 %v392
        %v562 = vunpack.c.h.b16 %v392
        %v563 = vunpack.c.l.b16 %v393
        %v564 = vunpack.c.h.b16 %v393
        %v565 = vunpack.c.l.b16 %v394
        %v566 = vunpack.c.h.b16 %v394
        %v567 = vunpack.c.l.b16 %v395
        %v568 = vunpack.c.h.b16 %v395
        %v569 = vunpack.c.l.b16 %v396
        %v570 = vunpack.c.h.b16 %v396
        %v571 = vunpack.c.l.b16 %v397
        %v572 = vunpack.c.h.b16 %v397
        %v573 = vunpack.c.l.b16 %v398
        %v574 = vunpack.c.h.b16 %v398
        %v575 = vunpack.c.l.b16 %v399
        %v576 = vunpack.c.h.b16 %v399
        %v577 = vunpack.c.l.b16 %v400
        %v578 = vunpack.c.h.b16 %v400
        %v579 = vunpack.c.l.b16 %v401
        %v580 = vunpack.c.h.b16 %v401
        %v581 = vunpack.c.l.b16 %v402
        %v582 = vunpack.c.h.b16 %v402
        %v583 = vunpack.c.l.b16 %v403
        %v584 = vunpack.c.h.b16 %v403
        %v585 = vunpack.c.l.b16 %v404
        %v586 = vunpack.c.h.b16 %v404
        %v587 = vunpack.c.l.b16 %v405
        %v588 = vunpack.c.h.b16 %v405
        %v589 = vunpack.c.l.b16 %v406
        %v590 = vunpack.c.h.b16 %v406
        %v591 = vunpack.c.l.b16 %v407
        %v592 = vunpack.c.h.b16 %v407
        %v593 = vunpack.c.l.b16 %v408
        %v594 = vunpack.c.h.b16 %v408
        %v595 = vunpack.c.l.b16 %v409
        %v596 = vunpack.c.h.b16 %v409
        %v597 = vunpack.c.l.b16 %v410
        %v598 = vunpack.c.h.b16 %v410
        %v599 = vunpack.c.l.b16 %v411
        %v600 = vunpack.c.h.b16 %v411
        %v601 = vunpack.c.l.b16 %v412
        %v602 = vunpack.c.h.b16 %v412
        %v603 = vunpack.c.l.b16 %v413
        %v604 = vunpack.c.h.b16 %v413
        %v605 = vunpack.c.l.b16 %v414
        %v606 = vunpack.c.h.b16 %v414
        %v607 = vpack.c.b16 %v481, %v479
        %v608 = vpack.c.b16 %v482, %v480
        %v609 = vpack.c.b16 %v485, %v483
        %v610 = vpack.c.b16 %v486, %v484
        %v611 = vpack.c.b16 %v489, %v487
        %v612 = vpack.c.b16 %v490, %v488
        %v613 = vpack.c.b16 %v493, %v491
        %v614 = vpack.c.b16 %v494, %v492
        %v615 = vpack.c.b16 %v497, %v495
        %v616 = vpack.c.b16 %v498, %v496
        %v617 = vpack.c.b16 %v501, %v499
        %v618 = vpack.c.b16 %v502, %v500
        %v619 = vpack.c.b16 %v505, %v503
        %v620 = vpack.c.b16 %v506, %v504
        %v621 = vpack.c.b16 %v509, %v507
        %v622 = vpack.c.b16 %v510, %v508
        %v623 = vpack.c.b16 %v513, %v511
        %v624 = vpack.c.b16 %v514, %v512
        %v625 = vpack.c.b16 %v517, %v515
        %v626 = vpack.c.b16 %v518, %v516
        %v627 = vpack.c.b16 %v521, %v519
        %v628 = vpack.c.b16 %v522, %v520
        %v629 = vpack.c.b16 %v525, %v523
        %v630 = vpack.c.b16 %v526, %v524
        %v631 = vpack.c.b16 %v529, %v527
        %v632 = vpack.c.b16 %v530, %v528
        %v633 = vpack.c.b16 %v533, %v531
        %v634 = vpack.c.b16 %v534, %v532
        %v635 = vpack.c.b16 %v537, %v535
        %v636 = vpack.c.b16 %v538, %v536
        %v637 = vpack.c.b16 %v541, %v539
        %v638 = vpack.c.b16 %v542, %v540
        %v639 = vpack.c.b16 %v545, %v543
        %v640 = vpack.c.b16 %v546, %v544
        %v641 = vpack.c.b16 %v549, %v547
        %v642 = vpack.c.b16 %v550, %v548
        %v643 = vpack.c.b16 %v553, %v551
        %v644 = vpack.c.b16 %v554, %v552
        %v645 = vpack.c.b16 %v557, %v555
        %v646 = vpack.c.b16 %v558, %v556
        %v647 = vpack.c.b16 %v561, %v559
        %v648 = vpack.c.b16 %v562, %v560
        %v649 = vpack.c.b16 %v565, %v563
        %v650 = vpack.c.b16 %v566, %v564
        %v651 = vpack.c.b16 %v569, %v567
        %v652 = vpack.c.b16 %v570, %v568
        %v653 = vpack.c.b16 %v573, %v571
        %v654 = vpack.c.b16 %v574, %v572
        %v655 = vpack.c.b16 %v577, %v575
        %v656 = vpack.c.b16 %v578, %v576
        %v657 = vpack.c.b16 %v581, %v579
        %v658 = vpack.c.b16 %v582, %v580
        %v659 = vpack.c.b16 %v585, %v583
        %v660 = vpack.c.b16 %v586, %v584
        %v661 = vpack.c.b16 %v589, %v587
        %v662 = vpack.c.b16 %v590, %v588
        %v663 = vpack.c.b16 %v593, %v591
        %v664 = vpack.c.b16 %v594, %v592
        %v665 = vpack.c.b16 %v597, %v595
        %v666 = vpack.c.b16 %v598, %v596
        %v667 = vpack.c.b16 %v601, %v599
        %v668 = vpack.c.b16 %v602, %v600
        %v669 = vpack.c.b16 %v605, %v603
        %v670 = vpack.c.b16 %v606, %v604
        %735 = vmatprep.subr.bf16.mxu0 %v608
        %736 = vmatpush1.bf16.msra.mxu0 %v607
        %737 = vmatprep.subr.bf16.mxu0 %v610
        %738 = vmatpush1.bf16.msra.mxu0 %v609
        %739 = vmatprep.subr.bf16.mxu0 %v612
        %740 = vmatpush1.bf16.msra.mxu0 %v611
        %741 = vmatprep.subr.bf16.mxu0 %v614
        %742 = vmatpush1.bf16.msra.mxu0 %v613
        %743 = vmatprep.subr.bf16.mxu0 %v616
        %744 = vmatpush1.bf16.msra.mxu0 %v615
        %745 = vmatprep.subr.bf16.mxu0 %v618
        %746 = vmatpush1.bf16.msra.mxu0 %v617
        %747 = vmatprep.subr.bf16.mxu0 %v620
        %748 = vmatpush1.bf16.msra.mxu0 %v619
        %749 = vmatprep.subr.bf16.mxu0 %v622
        %750 = vmatpush1.bf16.msra.mxu0 %v621
        %751 = vmatprep.subr.bf16.mxu0 %v624
        %752 = vmatpush1.bf16.msra.mxu0 %v623
        %753 = vmatprep.subr.bf16.mxu0 %v626
        %754 = vmatpush1.bf16.msra.mxu0 %v625
        %755 = vmatprep.subr.bf16.mxu0 %v628
        %756 = vmatpush1.bf16.msra.mxu0 %v627
        %757 = vmatprep.subr.bf16.mxu0 %v630
        %758 = vmatpush1.bf16.msra.mxu0 %v629
        %759 = vmatprep.subr.bf16.mxu0 %v632
        %760 = vmatpush1.bf16.msra.mxu0 %v631
        %761 = vmatprep.subr.bf16.mxu0 %v634
        %762 = vmatpush1.bf16.msra.mxu0 %v633
        %763 = vmatprep.subr.bf16.mxu0 %v636
        %764 = vmatpush1.bf16.msra.mxu0 %v635
        %765 = vmatprep.subr.bf16.mxu0 %v638
        %766 = vmatpush1.bf16.msra.mxu0 %v637
        %767 = vmatprep.mubr.bf16.mxu0 %v348
        %768 = vmatmul.mubr.bf16.gmra.mrb[0].mxu0 %v347
        %v769 = vpop.f32.mrb[0].mxu0
        %v770 = vadd.f32 0.0, %v769
        %v771 = vpop.f32.mrb[0].mxu0
        %v772 = vadd.f32 0.0, %v771
        %v773 = vpop.f32.mrb[0].mxu0
        %v774 = vpop.f32.mrb[0].mxu0
        %775 = vdwg.mxu0
        %776 = vmatprep.subr.bf16.mxu0 %v640
        %777 = vmatpush1.bf16.msra.mxu0 %v639
        %778 = vmatprep.subr.bf16.mxu0 %v642
        %779 = vmatpush1.bf16.msra.mxu0 %v641
        %780 = vmatprep.subr.bf16.mxu0 %v644
        %781 = vmatpush1.bf16.msra.mxu0 %v643
        %782 = vmatprep.subr.bf16.mxu0 %v646
        %783 = vmatpush1.bf16.msra.mxu0 %v645
        %784 = vmatprep.subr.bf16.mxu0 %v648
        %785 = vmatpush1.bf16.msra.mxu0 %v647
        %786 = vmatprep.subr.bf16.mxu0 %v650
        %787 = vmatpush1.bf16.msra.mxu0 %v649
        %788 = vmatprep.subr.bf16.mxu0 %v652
        %789 = vmatpush1.bf16.msra.mxu0 %v651
        %790 = vmatprep.subr.bf16.mxu0 %v654
        %791 = vmatpush1.bf16.msra.mxu0 %v653
        %792 = vmatprep.subr.bf16.mxu0 %v656
        %793 = vmatpush1.bf16.msra.mxu0 %v655
        %794 = vmatprep.subr.bf16.mxu0 %v658
        %795 = vmatpush1.bf16.msra.mxu0 %v657
        %796 = vmatprep.subr.bf16.mxu0 %v660
        %797 = vmatpush1.bf16.msra.mxu0 %v659
        %798 = vmatprep.subr.bf16.mxu0 %v662
        %799 = vmatpush1.bf16.msra.mxu0 %v661
        %800 = vmatprep.subr.bf16.mxu0 %v664
        %801 = vmatpush1.bf16.msra.mxu0 %v663
        %802 = vmatprep.subr.bf16.mxu0 %v666
        %803 = vmatpush1.bf16.msra.mxu0 %v665
        %804 = vmatprep.subr.bf16.mxu0 %v668
        %805 = vmatpush1.bf16.msra.mxu0 %v667
        %806 = vmatprep.subr.bf16.mxu0 %v670
        %807 = vmatpush1.bf16.msra.mxu0 %v669
        %808 = vmatprep.mubr.bf16.mxu0 %v350
        %809 = vmatmul.mubr.bf16.gmra.mrb[0].mxu0 %v349
        %v810 = vpop.f32.mrb[0].mxu0
        %v811 = vadd.f32 %v770, %v810
        %v812 = vpop.f32.mrb[0].mxu0
        %v813 = vadd.f32 %v772, %v812
        %v814 = vpop.f32.mrb[0].mxu0
        %v815 = vpop.f32.mrb[0].mxu0
        %816 = vdwg.mxu0
        %v817 = vadd.f32 %v341, %v811
        %v818 = vadd.f32 %v342, %v813
        %819 = vst [vmem:[#allocation2] sm:$0xff] %v817
        %820 = vst [vmem:[#allocation2 + $0x8] sm:$0xff] %v818
        %p821 = scmp.eq.s32.totalorder %s29, 1
        // Predicated region
        $region61: #{tpu_custom_call.1} parent=43 // pred_check
          %p822 = pneg %p821
        $region62: #{tpu_custom_call.1} parent=43 // pred_check_branch
          %824 = sbr.rel (%p822) target = $region64
        $region63: #{tpu_custom_call.1} parent=43 // pred_region
          %v825 = vld [vmem:[#allocation2] sm:$0xff]
          %v826 = vld [vmem:[#allocation2 + $0x8] sm:$0xff]
          %v827 = vld [vmem:[%s2] sm:$0x3]
          %v829 = vlaneseq
          %v830 = vshrl.u32 %v829, 7
          %v831 = vsub.s32 0, %v830
          %v832 = vrot.slane %v827, %v831
          %v833 = vlaneseq
          %v834 = vshrl.u32 %v833, 7
          %v835 = vsub.s32 1, %v834
          %v836 = vrot.slane %v827, %v835
          %v839 = vadd.f32 %v825, %v832
          %v840 = vadd.f32 %v826, %v836
          %v841 = vld [vmem:[%s3] sm:$0x3]
          %vm842 = vcmp.gt.f32.partialorder %v839, 0.0
          %vm843 = vcmp.gt.f32.partialorder %v840, 0.0
          %v845 = vlaneseq
          %v846 = vshrl.u32 %v845, 7
          %v847 = vsub.s32 0, %v846
          %v848 = vrot.slane %v841, %v847
          %v849 = vlaneseq
          %v850 = vshrl.u32 %v849, 7
          %v851 = vsub.s32 1, %v850
          %v852 = vrot.slane %v841, %v851
          %v855 = vmul.f32 %v848, %v839
          %v856 = vmul.f32 %v852, %v840
          %v857 = vsel %vm842, %v839, %v855
          %v858 = vsel %vm843, %v840, %v856
          %v859 = vpack.c.bf16 %v857, %v857
          %v860 = vpack.c.bf16 %v858, %v858
          %v861 = vld [vmem:[#allocation8] sm:$0xf]
          %v862 = vld [vmem:[#allocation8 + $0x4] sm:$0xf]
          %v863 = vld [vmem:[#allocation8 + $0x8] sm:$0xf]
          %v864 = vld [vmem:[#allocation8 + $0xc] sm:$0xf]
          %v865 = vld [vmem:[#allocation8 + $0x10] sm:$0xf]
          %v866 = vld [vmem:[#allocation8 + $0x14] sm:$0xf]
          %v867 = vld [vmem:[#allocation8 + $0x18] sm:$0xf]
          %v868 = vld [vmem:[#allocation8 + $0x1c] sm:$0xf]
          %v869 = vld [vmem:[#allocation8 + $0x20] sm:$0xf]
          %v870 = vld [vmem:[#allocation8 + $0x24] sm:$0xf]
          %v871 = vld [vmem:[#allocation8 + $0x28] sm:$0xf]
          %v872 = vld [vmem:[#allocation8 + $0x2c] sm:$0xf]
          %v873 = vld [vmem:[#allocation8 + $0x30] sm:$0xf]
          %v874 = vld [vmem:[#allocation8 + $0x34] sm:$0xf]
          %v875 = vld [vmem:[#allocation8 + $0x38] sm:$0xf]
          %v876 = vld [vmem:[#allocation8 + $0x3c] sm:$0xf]
          %v877 = vld [vmem:[#allocation8 + $0x40] sm:$0xf]
          %v878 = vld [vmem:[#allocation8 + $0x44] sm:$0xf]
          %v879 = vld [vmem:[#allocation8 + $0x48] sm:$0xf]
          %v880 = vld [vmem:[#allocation8 + $0x4c] sm:$0xf]
          %v881 = vld [vmem:[#allocation8 + $0x50] sm:$0xf]
          %v882 = vld [vmem:[#allocation8 + $0x54] sm:$0xf]
          %v883 = vld [vmem:[#allocation8 + $0x58] sm:$0xf]
          %v884 = vld [vmem:[#allocation8 + $0x5c] sm:$0xf]
          %v885 = vld [vmem:[#allocation8 + $0x60] sm:$0xf]
          %v886 = vld [vmem:[#allocation8 + $0x64] sm:$0xf]
          %v887 = vld [vmem:[#allocation8 + $0x68] sm:$0xf]
          %v888 = vld [vmem:[#allocation8 + $0x6c] sm:$0xf]
          %v889 = vld [vmem:[#allocation8 + $0x70] sm:$0xf]
          %v890 = vld [vmem:[#allocation8 + $0x74] sm:$0xf]
          %v891 = vld [vmem:[#allocation8 + $0x78] sm:$0xf]
          %v892 = vld [vmem:[#allocation8 + $0x7c] sm:$0xf]
          %v893 = vld [vmem:[%s5] sm:$0x1]
          %v895 = vlaneseq
          %v896 = vshrl.u32 %v895, 7
          %v897 = vsub.s32 0, %v896
          %v898 = vrot.slane %v893, %v897
          %v932 = vunpack.c.l.b16 %v861
          %v933 = vunpack.c.l.b16 %v862
          %v934 = vunpack.c.l.b16 %v863
          %v935 = vunpack.c.l.b16 %v864
          %v936 = vunpack.c.l.b16 %v865
          %v937 = vunpack.c.l.b16 %v866
          %v938 = vunpack.c.l.b16 %v867
          %v939 = vunpack.c.l.b16 %v868
          %v940 = vunpack.c.l.b16 %v869
          %v941 = vunpack.c.l.b16 %v870
          %v942 = vunpack.c.l.b16 %v871
          %v943 = vunpack.c.l.b16 %v872
          %v944 = vunpack.c.l.b16 %v873
          %v945 = vunpack.c.l.b16 %v874
          %v946 = vunpack.c.l.b16 %v875
          %v947 = vunpack.c.l.b16 %v876
          %v948 = vunpack.c.l.b16 %v877
          %v949 = vunpack.c.l.b16 %v878
          %v950 = vunpack.c.l.b16 %v879
          %v951 = vunpack.c.l.b16 %v880
          %v952 = vunpack.c.l.b16 %v881
          %v953 = vunpack.c.l.b16 %v882
          %v954 = vunpack.c.l.b16 %v883
          %v955 = vunpack.c.l.b16 %v884
          %v956 = vunpack.c.l.b16 %v885
          %v957 = vunpack.c.l.b16 %v886
          %v958 = vunpack.c.l.b16 %v887
          %v959 = vunpack.c.l.b16 %v888
          %v960 = vunpack.c.l.b16 %v889
          %v961 = vunpack.c.l.b16 %v890
          %v962 = vunpack.c.l.b16 %v891
          %v963 = vunpack.c.l.b16 %v892
          %v964 = vpack.c.b16 %v933, %v932
          %v965 = vpack.c.b16 %v935, %v934
          %v966 = vpack.c.b16 %v937, %v936
          %v967 = vpack.c.b16 %v939, %v938
          %v968 = vpack.c.b16 %v941, %v940
          %v969 = vpack.c.b16 %v943, %v942
          %v970 = vpack.c.b16 %v945, %v944
          %v971 = vpack.c.b16 %v947, %v946
          %v972 = vpack.c.b16 %v949, %v948
          %v973 = vpack.c.b16 %v951, %v950
          %v974 = vpack.c.b16 %v953, %v952
          %v975 = vpack.c.b16 %v955, %v954
          %v976 = vpack.c.b16 %v957, %v956
          %v977 = vpack.c.b16 %v959, %v958
          %v978 = vpack.c.b16 %v961, %v960
          %v979 = vpack.c.b16 %v963, %v962
          %996 = vmatprep.subr.bf16.mxu0 0
          %997 = vmatpush1.bf16.msra.mxu0 %v964
          %998 = vmatprep.subr.bf16.mxu0 0
          %999 = vmatpush1.bf16.msra.mxu0 %v965
          %1000 = vmatprep.subr.bf16.mxu0 0
          %1001 = vmatpush1.bf16.msra.mxu0 %v966
          %1002 = vmatprep.subr.bf16.mxu0 0
          %1003 = vmatpush1.bf16.msra.mxu0 %v967
          %1004 = vmatprep.subr.bf16.mxu0 0
          %1005 = vmatpush1.bf16.msra.mxu0 %v968
          %1006 = vmatprep.subr.bf16.mxu0 0
          %1007 = vmatpush1.bf16.msra.mxu0 %v969
          %1008 = vmatprep.subr.bf16.mxu0 0
          %1009 = vmatpush1.bf16.msra.mxu0 %v970
          %1010 = vmatprep.subr.bf16.mxu0 0
          %1011 = vmatpush1.bf16.msra.mxu0 %v971
          %1012 = vmatprep.subr.bf16.mxu0 0
          %1013 = vmatpush1.bf16.msra.mxu0 %v972
          %1014 = vmatprep.subr.bf16.mxu0 0
          %1015 = vmatpush1.bf16.msra.mxu0 %v973
          %1016 = vmatprep.subr.bf16.mxu0 0
          %1017 = vmatpush1.bf16.msra.mxu0 %v974
          %1018 = vmatprep.subr.bf16.mxu0 0
          %1019 = vmatpush1.bf16.msra.mxu0 %v975
          %1020 = vmatprep.subr.bf16.mxu0 0
          %1021 = vmatpush1.bf16.msra.mxu0 %v976
          %1022 = vmatprep.subr.bf16.mxu0 0
          %1023 = vmatpush1.bf16.msra.mxu0 %v977
          %1024 = vmatprep.subr.bf16.mxu0 0
          %1025 = vmatpush1.bf16.msra.mxu0 %v978
          %1026 = vmatprep.subr.bf16.mxu0 0
          %1027 = vmatpush1.bf16.msra.mxu0 %v979
          %1028 = vmatprep.mubr.bf16.mxu0 %v860
          %1029 = vmatmul.mubr.bf16.gmra.mrb[0].mxu0 %v859
          %v1030 = vpop.f32.mrb[0].mxu0
          %v1031 = vadd.f32 %v898, %v1030
          %v1032 = vpop.f32.mrb[0].mxu0
          %v1033 = vpop.f32.mrb[0].mxu0
          %v1034 = vpop.f32.mrb[0].mxu0
          %1035 = vdwg.mxu0
          %1036 = vst [vmem:[#allocation9] sm:$0xff] %v1031
        $region64: #{tpu_custom_call.1} parent=43 // pred_fallthru
          _
        // Predicated region
        $region65: #{tpu_custom_call.1} parent=43 // pred_check
          %p1037 = pneg %p192
        $region66: #{tpu_custom_call.1} parent=43 // pred_check_branch
          %1039 = sbr.rel (%p1037) target = $region68
        $region67: #{tpu_custom_call.1} parent=43 // pred_region
          %s1041 = ssub.s32 128, 128
          %1042 = vsyncadd [#allocation5], %s1041
          %s1043 = smul.addr %s28, 128
          %s1044 = scalar_lea.hbm %s6, %s1043
          %s1046 = sshll.u32 [#allocation9], 4
          %s1047 = int_to_ptr.vmem [resolvable:$true] %s1046
          %1049 = dma.vmem_to_hbm [thread:$0]  %s1047, 128, %s1044, [#allocation5]
        $region68: #{tpu_custom_call.1} parent=43 // pred_fallthru
          _
        // Predicated region
        $region69: #{tpu_custom_call.1} parent=43 // pred_check
          %p1050 = pneg %p192
        $region70: #{tpu_custom_call.1} parent=43 // pred_check_branch
          %1052 = sbr.rel (%p1050) target = $region72
        $region71: #{tpu_custom_call.1} parent=43 // pred_region
          %1053 = dma.done [#allocation5], 128
        $region72: #{tpu_custom_call.1} parent=43 // pred_fallthru
          _
      $region44: #{tpu_custom_call.1} parent=5 // pred_fallthru
        _
      %p1054 = scmp.le.s32.totalorder 2, %s19
      // Predicated region
      $region73: #{tpu_custom_call.1} parent=5 // pred_check
        %p1055 = pneg %p1054
      $region74: #{tpu_custom_call.1} parent=5 // pred_check_branch
        %1057 = sbr.rel (%p1055) target = $region76
      $region75: #{tpu_custom_call.1} parent=5 // pred_region
        %s1058 = ssub.s32 %s19, 2
      $region76: #{tpu_custom_call.1} parent=5 // pred_fallthru
        _
    $region6: #{tpu_custom_call.1} parent=1 // loop_footer
      %s23 = sadd.s32 1, %s19
    $region7: #{tpu_custom_call.1} parent=1 // loop_footer_branch
      %18 = sbr.rel target = $region3
    $region8: #{tpu_custom_call.1} parent=1 // loop_exit
      _
    %1059 = vsyncpa [#allocation4], 1
    %s1060 = scalar_lea.sflag [#allocation4], 1
    %1061 = vsyncpa %s1060, 1
    %1062 = vsyncpa [#allocation7], 1
    %s1063 = scalar_lea.sflag [#allocation7], 1
    %1064 = vsyncpa %s1063, 1
    %1065 = vsyncpa [#allocation5], 1
    %s1066 = scalar_lea.sflag [#allocation5], 1
    %1067 = vsyncpa %s1066, 1

</llo_original>
